<compile_context>
chip_gen: v7x
topology: tpu7x:2x2x1
jax: 0.10.0
libtpu: 0.0.40
codegen_flags: <defaults>
</compile_context>

<pallas_src>
import math

import jax
import jax.numpy as jnp
from jax.experimental import pallas as pl
from jax.experimental.pallas import tpu as pltpu

INPUT_SIZE = 3
HIDDEN = 256
OUTPUT_SIZE = 3

IN_PAD = 8     # padded feature width (f32 sublane multiple); col 3 = bias "1"
OUT_PAD = 128  # lane-dense output width (multiple of 128)


def policy_net_kernel(x_ref, w1_ref, w2_ref, w3_ref, b23_ref, o_ref):
    # x_ref  : (TB, 8)    features in cols 0..2, constant 1.0 in col 3
    # w1_ref : (8, 256)   row 3 holds b1 (bias fused into the first matmul)
    # w2_ref : (256, 256)
    # w3_ref : (256, 128) columns 3..127 zero-padded
    # b23_ref: (1, 384)   [ b2 (256) | b3 padded to 128 ]
    # o_ref  : (TB, 128)  lane-dense output tile; real outputs are cols 0..2
    x = x_ref[...]

    h1 = jnp.maximum(
        jnp.dot(x, w1_ref[...], preferred_element_type=jnp.float32), 0.0)

    h2 = jnp.maximum(
        jnp.dot(h1, w2_ref[...], preferred_element_type=jnp.float32)
        + b23_ref[:, 0:HIDDEN], 0.0)

    out = jnp.dot(h2, w3_ref[...], preferred_element_type=jnp.float32)
    o_ref[...] = (out + b23_ref[:, HIDDEN:HIDDEN + OUT_PAD]).astype(o_ref.dtype)


def _pack_params(params):
    """Repack logical PyTorch-style params into the kernel's padded layout."""
    w1, b1 = params["w1"], params["b1"]
    w2, b2 = params["w2"], params["b2"]
    w3, b3 = params["w3"], params["b3"]

    # Layer 1: pad contraction dim 3 -> 8 and fuse the bias as row 3.
    w1a = jnp.zeros((IN_PAD, HIDDEN), jnp.float32)
    w1a = w1a.at[:INPUT_SIZE, :].set(w1.astype(jnp.float32))
    w1a = w1a.at[INPUT_SIZE, :].set(b1.reshape(-1).astype(jnp.float32))

    # Layer 3: pad output dim 3 -> 128 (zero columns -> zero extra outputs).
    w3p = jnp.zeros((HIDDEN, OUT_PAD), jnp.float32)
    w3p = w3p.at[:, :OUTPUT_SIZE].set(w3.astype(jnp.float32))
    b3p = jnp.zeros((1, OUT_PAD), jnp.float32)
    b3p = b3p.at[:, :OUTPUT_SIZE].set(b3.reshape(1, -1).astype(jnp.float32))

    # Concatenate remaining biases into one array (fewer tiny DMAs).
    b23 = jnp.concatenate([b2.reshape(1, -1).astype(jnp.float32), b3p], axis=1)

    return w1a, w2.astype(jnp.float32), w3p, b23


def policy_net_forward(x, params, *, block_b=128):
    """x: (B, INPUT_SIZE) f32.  params: dict of w1,b1,w2,b2,w3,b3."""
    B = x.shape[0]
    w1a, w2, w3p, b23 = _pack_params(params)

    # Batch tile: multiple of 8 sublanes; 128-row tiles keep MXU passes full
    # while avoiding excessive zero-padding for small batches.
    TB = min(block_b, max(8, pl.cdiv(B, 8) * 8))
    B_pad = pl.cdiv(B, TB) * TB

    # Pad features 3 -> 8; column 3 is the constant-1 "bias feature".
    xp = jnp.zeros((B_pad, IN_PAD), jnp.float32)
    xp = xp.at[:B, :INPUT_SIZE].set(x.astype(jnp.float32))
    xp = xp.at[:, INPUT_SIZE].set(1.0)

    const = lambda i: (0, 0)  # weights/biases resident across all batch tiles

    out = pl.pallas_call(
        policy_net_kernel,
        out_shape=jax.ShapeDtypeStruct((B_pad, OUT_PAD), jnp.float32),
        grid=(B_pad // TB,),
        in_specs=[
            pl.BlockSpec((TB, IN_PAD), lambda i: (i, 0)),
            pl.BlockSpec(w1a.shape, const),
            pl.BlockSpec(w2.shape, const),
            pl.BlockSpec(w3p.shape, const),
            pl.BlockSpec(b23.shape, const),
        ],
        out_specs=pl.BlockSpec((TB, OUT_PAD), lambda i: (i, 0)),
        compiler_params=pltpu.CompilerParams(
            dimension_semantics=("parallel",)),
    )(xp, w1a, w2, w3p, b23)

    return out[:B, :OUTPUT_SIZE]


def init_params(key):
    """Deterministic init mirroring PyTorch nn.Linear default:
    U(-1/sqrt(fan_in), 1/sqrt(fan_in)) for both weight and bias."""
    def linear(key, fan_in, fan_out):
        kw, kb = jax.random.split(key)
        bound = 1.0 / math.sqrt(fan_in)
        w = jax.random.uniform(kw, (fan_in, fan_out), jnp.float32,
                               minval=-bound, maxval=bound)
        b = jax.random.uniform(kb, (1, fan_out), jnp.float32,
                               minval=-bound, maxval=bound)
        return w, b

    k1, k2, k3 = jax.random.split(key, 3)
    w1, b1 = linear(k1, INPUT_SIZE, HIDDEN)
    w2, b2 = linear(k2, HIDDEN, HIDDEN)
    w3, b3 = linear(k3, HIDDEN, OUTPUT_SIZE)
    return dict(w1=w1, b1=b1, w2=w2, b2=b2, w3=w3, b3=b3)


def policy_net_ref(x, params):
    """Pure-JAX reference for correctness checking."""
    h = jnp.maximum(x @ params["w1"] + params["b1"], 0.0)
    h = jnp.maximum(h @ params["w2"] + params["b2"], 0.0)
    return h @ params["w3"] + params["b3"]


if __name__ == "__main__":
    key = jax.random.PRNGKey(0)
    kx, kp = jax.random.split(key)

    params = init_params(kp)
    fwd = jax.jit(policy_net_forward)  # packing + pallas_call fused under jit

    # Small batch (exercises the TB=8 path).
    B = 8
    x = jax.random.normal(kx, (B, INPUT_SIZE), jnp.float32)
    out = jax.block_until_ready(fwd(x, params))
    ref = policy_net_ref(x, params)
    assert out.shape == (B, OUTPUT_SIZE)
    assert jnp.allclose(out, ref, atol=1e-4, rtol=1e-4), "mismatch (B=8)"

    # Larger batch (exercises the multi-tile / megacore path).
    B2 = 300  # deliberately not a multiple of the tile size
    x2 = jax.random.normal(jax.random.fold_in(kx, 1), (B2, INPUT_SIZE),
                           jnp.float32)
    out2 = jax.block_until_ready(fwd(x2, params))
    ref2 = policy_net_ref(x2, params)
    assert out2.shape == (B2, OUTPUT_SIZE)
    assert jnp.allclose(out2, ref2, atol=1e-4, rtol=1e-4), "mismatch (B=300)"

    print("KERNEL_OK")
</pallas_src>

<mosaic_0001>
module attributes {stable_mosaic.version = 11 : i64} {
  func.func @policy_net_kernel(%arg0: i32, %arg1: memref<8x8xf32, #tpu.memory_space<vmem>>, %arg2: memref<8x256xf32, #tpu.memory_space<vmem>>, %arg3: memref<256x256xf32, #tpu.memory_space<vmem>>, %arg4: memref<256x128xf32, #tpu.memory_space<vmem>>, %arg5: memref<1x384xf32, #tpu.memory_space<vmem>>, %arg6: memref<8x128xf32, #tpu.memory_space<vmem>>) attributes {dimension_semantics = [#tpu.dimension_semantics<parallel>], iteration_bounds = array<i64: 1>, scalar_prefetch = 0 : i64, scratch_operands = 0 : i64, tpu.core_type = #tpu.core_type<tc>, window_params = [{transform_indices = @transform_0, window_bounds = array<i64: 8, 8>}, {pipeline_mode = #tpu.pipeline_mode<synchronous>, transform_indices = @transform_1, window_bounds = array<i64: 8, 256>}, {pipeline_mode = #tpu.pipeline_mode<synchronous>, transform_indices = @transform_2, window_bounds = array<i64: 256, 256>}, {pipeline_mode = #tpu.pipeline_mode<synchronous>, transform_indices = @transform_3, window_bounds = array<i64: 256, 128>}, {pipeline_mode = #tpu.pipeline_mode<synchronous>, transform_indices = @transform_4, window_bounds = array<i64: 1, 384>}, {transform_indices = @transform_5, window_bounds = array<i64: 8, 128>}]} {
    %c0 = arith.constant 0 : index
    %c0_0 = arith.constant 0 : index
    %0 = vector.load %arg1[%c0, %c0_0] : memref<8x8xf32, #tpu.memory_space<vmem>>, vector<8x8xf32>
    %c0_1 = arith.constant 0 : index
    %c0_2 = arith.constant 0 : index
    %1 = vector.load %arg2[%c0_1, %c0_2] : memref<8x256xf32, #tpu.memory_space<vmem>>, vector<8x256xf32>
    %cst = arith.constant dense<0.000000e+00> : vector<8x256xf32>
    %2 = tpu.matmul %0, %1, %cst {dimension_numbers = #tpu.dot_dimension_numbers<[1], [0], [0], [1], [0, 0, 1, 1], [], []>} : vector<8x8xf32>, vector<8x256xf32>, vector<8x256xf32> -> vector<8x256xf32>
    %cst_3 = arith.constant 0.000000e+00 : f32
    %3 = vector.broadcast %cst_3 : f32 to vector<8x256xf32>
    %4 = arith.maximumf %2, %3 : vector<8x256xf32>
    %c0_4 = arith.constant 0 : index
    %c0_5 = arith.constant 0 : index
    %5 = vector.load %arg3[%c0_4, %c0_5] : memref<256x256xf32, #tpu.memory_space<vmem>>, vector<256x256xf32>
    %cst_6 = arith.constant dense<0.000000e+00> : vector<8x256xf32>
    %6 = tpu.matmul %4, %5, %cst_6 {dimension_numbers = #tpu.dot_dimension_numbers<[1], [0], [0], [1], [0, 0, 1, 1], [], []>} : vector<8x256xf32>, vector<256x256xf32>, vector<8x256xf32> -> vector<8x256xf32>
    %c0_7 = arith.constant 0 : index
    %c0_8 = arith.constant 0 : index
    %7 = vector.load %arg5[%c0_7, %c0_8] : memref<1x384xf32, #tpu.memory_space<vmem>>, vector<1x256xf32>
    %8 = vector.broadcast %7 : vector<1x256xf32> to vector<8x256xf32>
    %9 = arith.addf %6, %8 : vector<8x256xf32>
    %cst_9 = arith.constant 0.000000e+00 : f32
    %10 = vector.broadcast %cst_9 : f32 to vector<8x256xf32>
    %11 = arith.maximumf %9, %10 : vector<8x256xf32>
    %c0_10 = arith.constant 0 : index
    %c0_11 = arith.constant 0 : index
    %12 = vector.load %arg4[%c0_10, %c0_11] : memref<256x128xf32, #tpu.memory_space<vmem>>, vector<256x128xf32>
    %cst_12 = arith.constant dense<0.000000e+00> : vector<8x128xf32>
    %13 = tpu.matmul %11, %12, %cst_12 {dimension_numbers = #tpu.dot_dimension_numbers<[1], [0], [0], [1], [0, 0, 1, 1], [], []>} : vector<8x256xf32>, vector<256x128xf32>, vector<8x128xf32> -> vector<8x128xf32>
    %c0_13 = arith.constant 0 : index
    %c256 = arith.constant 256 : index
    %14 = vector.load %arg5[%c0_13, %c256] : memref<1x384xf32, #tpu.memory_space<vmem>>, vector<1x128xf32>
    %15 = vector.broadcast %14 : vector<1x128xf32> to vector<8x128xf32>
    %16 = arith.addf %13, %15 : vector<8x128xf32>
    %c0_14 = arith.constant 0 : index
    %c0_15 = arith.constant 0 : index
    %17 = vector.load %arg6[%c0_14, %c0_15] : memref<8x128xf32, #tpu.memory_space<vmem>>, vector<8x128xf32>
    tpu.vector_store %arg6[%c0_14, %c0_15], %16 {strides = array<i32>} : memref<8x128xf32, #tpu.memory_space<vmem>>, vector<8x128xf32>,
    return
  }
  func.func @transform_0(%arg0: i32) -> (i32, i32) {
    %c0_i32 = arith.constant 0 : i32
    %c0_i32_0 = arith.constant 0 : i32
    return %arg0, %c0_i32 : i32, i32
  }
  func.func @transform_1(%arg0: i32) -> (i32, i32) {
    %c0_i32 = arith.constant 0 : i32
    %c0_i32_0 = arith.constant 0 : i32
    %c0_i32_1 = arith.constant 0 : i32
    return %c0_i32, %c0_i32_0 : i32, i32
  }
  func.func @transform_2(%arg0: i32) -> (i32, i32) {
    %c0_i32 = arith.constant 0 : i32
    %c0_i32_0 = arith.constant 0 : i32
    %c0_i32_1 = arith.constant 0 : i32
    return %c0_i32, %c0_i32_0 : i32, i32
  }
  func.func @transform_3(%arg0: i32) -> (i32, i32) {
    %c0_i32 = arith.constant 0 : i32
    %c0_i32_0 = arith.constant 0 : i32
    %c0_i32_1 = arith.constant 0 : i32
    return %c0_i32, %c0_i32_0 : i32, i32
  }
  func.func @transform_4(%arg0: i32) -> (i32, i32) {
    %c0_i32 = arith.constant 0 : i32
    %c0_i32_0 = arith.constant 0 : i32
    %c0_i32_1 = arith.constant 0 : i32
    return %c0_i32, %c0_i32_0 : i32, i32
  }
  func.func @transform_5(%arg0: i32) -> (i32, i32) {
    %c0_i32 = arith.constant 0 : i32
    %c0_i32_0 = arith.constant 0 : i32
    return %arg0, %c0_i32 : i32, i32
  }
}

</mosaic_0001>

<llo_original>
// kernel: policy_net_forward.1
$region0: #{policy_net_forward.1}
  #allocation0 [shape = 'u32[]', space=smem, size = 0x4, offset = 0x4, fixed_abs, tag = 'smem constant byte address 0x4 - core index']
  #allocation1 [shape = 'u32[144,128]{1,0:T(1,128)}', space=vmem, size = 0x12000, scoped, tag = 'internal scratch']
  %s0 = inlined_call_operand.vmem [shape: f32[8,8], index: 0, kind: input, shape index: {}]
  %s1 = inlined_call_operand.vmem [shape: f32[8,256], index: 1, kind: input, shape index: {}]
  %s2 = inlined_call_operand.vmem [shape: f32[256,256], index: 2, kind: input, shape index: {}]
  %s3 = inlined_call_operand.vmem [shape: f32[256,128], index: 3, kind: input, shape index: {}]
  %s4 = inlined_call_operand.vmem [shape: f32[1,384], index: 4, kind: input, shape index: {}]
  %s5 = inlined_call_operand.vmem [shape: f32[8,128], index: 5, kind: output, shape index: {}]
  %s6 = sld [smem:[#allocation0]]
  $region30: #{policy_net_forward.1} parent=0
    _
  %s8 = ssub.s32 1, %s6
  %s9 = scalar_select 0, %s8, %s6
  // Predicated region
  $region2: #{policy_net_forward.1} parent=0 // pred_check
    _
  $region3: #{policy_net_forward.1} parent=0 // pred_check_branch
    %11 = sbr.rel (0) target = $region5
  $region4: #{policy_net_forward.1} parent=0 // pred_region
    _
  $region5: #{policy_net_forward.1} parent=0 // pred_fallthru
    _
  // Predicated region
  $region6: #{policy_net_forward.1} parent=0 // pred_check
    _
  $region7: #{policy_net_forward.1} parent=0 // pred_check_branch
    %13 = sbr.rel (0) target = $region9
  $region8: #{policy_net_forward.1} parent=0 // pred_region
    _
  $region9: #{policy_net_forward.1} parent=0 // pred_fallthru
    _
  // Predicated region
  $region10: #{policy_net_forward.1} parent=0 // pred_check
    _
  $region11: #{policy_net_forward.1} parent=0 // pred_check_branch
    %15 = sbr.rel (0) target = $region13
  $region12: #{policy_net_forward.1} parent=0 // pred_region
    _
  $region13: #{policy_net_forward.1} parent=0 // pred_fallthru
    _
  // Predicated region
  $region14: #{policy_net_forward.1} parent=0 // pred_check
    _
  $region15: #{policy_net_forward.1} parent=0 // pred_check_branch
    %17 = sbr.rel (0) target = $region17
  $region16: #{policy_net_forward.1} parent=0 // pred_region
    _
  $region17: #{policy_net_forward.1} parent=0 // pred_fallthru
    _
  // Predicated region
  $region18: #{policy_net_forward.1} parent=0 // pred_check
    _
  $region19: #{policy_net_forward.1} parent=0 // pred_check_branch
    %19 = sbr.rel (0) target = $region21
  $region20: #{policy_net_forward.1} parent=0 // pred_region
    _
  $region21: #{policy_net_forward.1} parent=0 // pred_fallthru
    _
  %v20 = vld [vmem:[%s0] sm:$0xff]
  %v21 = vld [vmem:[%s1] sm:$0xff]
  %v22 = vld [vmem:[%s1 + $0x8] sm:$0xff]
  %vm23 = vcmask 64512
  %v25 = vsel %vm23, %v20, 0
  %27 = vmatprep.subr.mxu0 %v22
  %28 = vmatpush1.msra.mxu0 %v21
  %29 = vmatprep.subr.mxu0 0.0
  %30 = vmatpush1.msra.mxu0 0.0
  %31 = vmatprep.subr.mxu0 0.0
  %32 = vmatpush1.msra.mxu0 0.0
  %33 = vmatprep.subr.mxu0 0.0
  %34 = vmatpush1.msra.mxu0 0.0
  %35 = vmatprep.subr.mxu0 0.0
  %36 = vmatpush1.msra.mxu0 0.0
  %37 = vmatprep.subr.mxu0 0.0
  %38 = vmatpush1.msra.mxu0 0.0
  %39 = vmatprep.subr.mxu0 0.0
  %40 = vmatpush1.msra.mxu0 0.0
  %41 = vmatprep.subr.mxu0 0.0
  %42 = vmatpush1.msra.mxu0 0.0
  %43 = vmatprep.subr.mxu0 0.0
  %44 = vmatpush1.msra.mxu0 0.0
  %45 = vmatprep.subr.mxu0 0.0
  %46 = vmatpush1.msra.mxu0 0.0
  %47 = vmatprep.subr.mxu0 0.0
  %48 = vmatpush1.msra.mxu0 0.0
  %49 = vmatprep.subr.mxu0 0.0
  %50 = vmatpush1.msra.mxu0 0.0
  %51 = vmatprep.subr.mxu0 0.0
  %52 = vmatpush1.msra.mxu0 0.0
  %53 = vmatprep.subr.mxu0 0.0
  %54 = vmatpush1.msra.mxu0 0.0
  %55 = vmatprep.subr.mxu0 0.0
  %56 = vmatpush1.msra.mxu0 0.0
  %57 = vmatprep.subr.mxu0 0.0
  %58 = vmatpush1.msra.mxu0 0.0
  %59 = vmatprep.subr.mxu0 0.0
  %60 = vmatpush1.msra.mxu0 0.0
  %61 = vmatprep.subr.mxu0 0.0
  %62 = vmatpush1.msra.mxu0 0.0
  %63 = vmatprep.subr.mxu0 0.0
  %64 = vmatpush1.msra.mxu0 0.0
  %65 = vmatprep.subr.mxu0 0.0
  %66 = vmatpush1.msra.mxu0 0.0
  %67 = vmatprep.subr.mxu0 0.0
  %68 = vmatpush1.msra.mxu0 0.0
  %69 = vmatprep.subr.mxu0 0.0
  %70 = vmatpush1.msra.mxu0 0.0
  %71 = vmatprep.subr.mxu0 0.0
  %72 = vmatpush1.msra.mxu0 0.0
  %73 = vmatprep.subr.mxu0 0.0
  %74 = vmatpush1.msra.mxu0 0.0
  %75 = vmatprep.subr.mxu0 0.0
  %76 = vmatpush1.msra.mxu0 0.0
  %77 = vmatprep.subr.mxu0 0.0
  %78 = vmatpush1.msra.mxu0 0.0
  %79 = vmatprep.subr.mxu0 0.0
  %80 = vmatpush1.msra.mxu0 0.0
  %81 = vmatprep.subr.mxu0 0.0
  %82 = vmatpush1.msra.mxu0 0.0
  %83 = vmatprep.subr.mxu0 0.0
  %84 = vmatpush1.msra.mxu0 0.0
  %85 = vmatprep.subr.mxu0 0.0
  %86 = vmatpush1.msra.mxu0 0.0
  %87 = vmatprep.subr.mxu0 0.0
  %88 = vmatpush1.msra.mxu0 0.0
  %89 = vmatprep.subr.mxu0 0.0
  %90 = vmatpush1.msra.mxu0 0.0
  %91 = vmatprep.mubr.f32.mxu0 0.0
  %92 = vmatmul.mubr.f32.gmra.mrb[0].mxu0 %v25
  %v93 = vpop.f32.mrb[0].mxu0
  %v94 = vadd.f32 0.0, %v93
  %v95 = vpop.f32.mrb[0].mxu0
  %v96 = vadd.f32 0.0, %v95
  %97 = vdwg.mxu0
  %v98 = vmax.f32 %v94, 0.0
  %v99 = vmax.f32 %v96, 0.0
  %v100 = vld [vmem:[%s2] sm:$0xff]
  %v101 = vld [vmem:[%s2 + $0x8] sm:$0xff]
  %v102 = vld [vmem:[%s2 + $0x10] sm:$0xff]
  %v103 = vld [vmem:[%s2 + $0x18] sm:$0xff]
  %v104 = vld [vmem:[%s2 + $0x20] sm:$0xff]
  %v105 = vld [vmem:[%s2 + $0x28] sm:$0xff]
  %v106 = vld [vmem:[%s2 + $0x30] sm:$0xff]
  %v107 = vld [vmem:[%s2 + $0x38] sm:$0xff]
  %v108 = vld [vmem:[%s2 + $0x40] sm:$0xff]
  %v109 = vld [vmem:[%s2 + $0x48] sm:$0xff]
  %v110 = vld [vmem:[%s2 + $0x50] sm:$0xff]
  %v111 = vld [vmem:[%s2 + $0x58] sm:$0xff]
  %v112 = vld [vmem:[%s2 + $0x60] sm:$0xff]
  %v113 = vld [vmem:[%s2 + $0x68] sm:$0xff]
  %v114 = vld [vmem:[%s2 + $0x70] sm:$0xff]
  %v115 = vld [vmem:[%s2 + $0x78] sm:$0xff]
  %v116 = vld [vmem:[%s2 + $0x80] sm:$0xff]
  %v117 = vld [vmem:[%s2 + $0x88] sm:$0xff]
  %v118 = vld [vmem:[%s2 + $0x90] sm:$0xff]
  %v119 = vld [vmem:[%s2 + $0x98] sm:$0xff]
  %v120 = vld [vmem:[%s2 + $0xa0] sm:$0xff]
  %v121 = vld [vmem:[%s2 + $0xa8] sm:$0xff]
  %v122 = vld [vmem:[%s2 + $0xb0] sm:$0xff]
  %v123 = vld [vmem:[%s2 + $0xb8] sm:$0xff]
  %v124 = vld [vmem:[%s2 + $0xc0] sm:$0xff]
  %v125 = vld [vmem:[%s2 + $0xc8] sm:$0xff]
  %v126 = vld [vmem:[%s2 + $0xd0] sm:$0xff]
  %v127 = vld [vmem:[%s2 + $0xd8] sm:$0xff]
  %v128 = vld [vmem:[%s2 + $0xe0] sm:$0xff]
  %v129 = vld [vmem:[%s2 + $0xe8] sm:$0xff]
  %v130 = vld [vmem:[%s2 + $0xf0] sm:$0xff]
  %v131 = vld [vmem:[%s2 + $0xf8] sm:$0xff]
  %v132 = vld [vmem:[%s2 + $0x100] sm:$0xff]
  %v133 = vld [vmem:[%s2 + $0x108] sm:$0xff]
  %v134 = vld [vmem:[%s2 + $0x110] sm:$0xff]
  %v135 = vld [vmem:[%s2 + $0x118] sm:$0xff]
  %v136 = vld [vmem:[%s2 + $0x120] sm:$0xff]
  %v137 = vld [vmem:[%s2 + $0x128] sm:$0xff]
  %v138 = vld [vmem:[%s2 + $0x130] sm:$0xff]
  %v139 = vld [vmem:[%s2 + $0x138] sm:$0xff]
  %v140 = vld [vmem:[%s2 + $0x140] sm:$0xff]
  %v141 = vld [vmem:[%s2 + $0x148] sm:$0xff]
  %v142 = vld [vmem:[%s2 + $0x150] sm:$0xff]
  %v143 = vld [vmem:[%s2 + $0x158] sm:$0xff]
  %v144 = vld [vmem:[%s2 + $0x160] sm:$0xff]
  %v145 = vld [vmem:[%s2 + $0x168] sm:$0xff]
  %v146 = vld [vmem:[%s2 + $0x170] sm:$0xff]
  %v147 = vld [vmem:[%s2 + $0x178] sm:$0xff]
  %v148 = vld [vmem:[%s2 + $0x180] sm:$0xff]
  %v149 = vld [vmem:[%s2 + $0x188] sm:$0xff]
  %v150 = vld [vmem:[%s2 + $0x190] sm:$0xff]
  %v151 = vld [vmem:[%s2 + $0x198] sm:$0xff]
  %v152 = vld [vmem:[%s2 + $0x1a0] sm:$0xff]
  %v153 = vld [vmem:[%s2 + $0x1a8] sm:$0xff]
  %v154 = vld [vmem:[%s2 + $0x1b0] sm:$0xff]
  %v155 = vld [vmem:[%s2 + $0x1b8] sm:$0xff]
  %v156 = vld [vmem:[%s2 + $0x1c0] sm:$0xff]
  %v157 = vld [vmem:[%s2 + $0x1c8] sm:$0xff]
  %v158 = vld [vmem:[%s2 + $0x1d0] sm:$0xff]
  %v159 = vld [vmem:[%s2 + $0x1d8] sm:$0xff]
  %v160 = vld [vmem:[%s2 + $0x1e0] sm:$0xff]
  %v161 = vld [vmem:[%s2 + $0x1e8] sm:$0xff]
  %v162 = vld [vmem:[%s2 + $0x1f0] sm:$0xff]
  %v163 = vld [vmem:[%s2 + $0x1f8] sm:$0xff]
  %v164 = vld [vmem:[%s4] sm:$0x3]
  %v166 = vlaneseq
  %v167 = vshrl.u32 %v166, 7
  %v168 = vsub.s32 0, %v167
  %v169 = vrot.slane %v164, %v168
  %v170 = vlaneseq
  %v171 = vshrl.u32 %v170, 7
  %v172 = vsub.s32 1, %v171
  %v173 = vrot.slane %v164, %v172
  %176 = vmatprep.subr.mxu0 %v101
  %177 = vmatpush1.msra.mxu0 %v100
  %178 = vmatprep.subr.mxu0 %v103
  %179 = vmatpush1.msra.mxu0 %v102
  %180 = vmatprep.subr.mxu0 %v105
  %181 = vmatpush1.msra.mxu0 %v104
  %182 = vmatprep.subr.mxu0 %v107
  %183 = vmatpush1.msra.mxu0 %v106
  %184 = vmatprep.subr.mxu0 %v109
  %185 = vmatpush1.msra.mxu0 %v108
  %186 = vmatprep.subr.mxu0 %v111
  %187 = vmatpush1.msra.mxu0 %v110
  %188 = vmatprep.subr.mxu0 %v113
  %189 = vmatpush1.msra.mxu0 %v112
  %190 = vmatprep.subr.mxu0 %v115
  %191 = vmatpush1.msra.mxu0 %v114
  %192 = vmatprep.subr.mxu0 %v117
  %193 = vmatpush1.msra.mxu0 %v116
  %194 = vmatprep.subr.mxu0 %v119
  %195 = vmatpush1.msra.mxu0 %v118
  %196 = vmatprep.subr.mxu0 %v121
  %197 = vmatpush1.msra.mxu0 %v120
  %198 = vmatprep.subr.mxu0 %v123
  %199 = vmatpush1.msra.mxu0 %v122
  %200 = vmatprep.subr.mxu0 %v125
  %201 = vmatpush1.msra.mxu0 %v124
  %202 = vmatprep.subr.mxu0 %v127
  %203 = vmatpush1.msra.mxu0 %v126
  %204 = vmatprep.subr.mxu0 %v129
  %205 = vmatpush1.msra.mxu0 %v128
  %206 = vmatprep.subr.mxu0 %v131
  %207 = vmatpush1.msra.mxu0 %v130
  %208 = vmatprep.subr.mxu0 %v133
  %209 = vmatpush1.msra.mxu0 %v132
  %210 = vmatprep.subr.mxu0 %v135
  %211 = vmatpush1.msra.mxu0 %v134
  %212 = vmatprep.subr.mxu0 %v137
  %213 = vmatpush1.msra.mxu0 %v136
  %214 = vmatprep.subr.mxu0 %v139
  %215 = vmatpush1.msra.mxu0 %v138
  %216 = vmatprep.subr.mxu0 %v141
  %217 = vmatpush1.msra.mxu0 %v140
  %218 = vmatprep.subr.mxu0 %v143
  %219 = vmatpush1.msra.mxu0 %v142
  %220 = vmatprep.subr.mxu0 %v145
  %221 = vmatpush1.msra.mxu0 %v144
  %222 = vmatprep.subr.mxu0 %v147
  %223 = vmatpush1.msra.mxu0 %v146
  %224 = vmatprep.subr.mxu0 %v149
  %225 = vmatpush1.msra.mxu0 %v148
  %226 = vmatprep.subr.mxu0 %v151
  %227 = vmatpush1.msra.mxu0 %v150
  %228 = vmatprep.subr.mxu0 %v153
  %229 = vmatpush1.msra.mxu0 %v152
  %230 = vmatprep.subr.mxu0 %v155
  %231 = vmatpush1.msra.mxu0 %v154
  %232 = vmatprep.subr.mxu0 %v157
  %233 = vmatpush1.msra.mxu0 %v156
  %234 = vmatprep.subr.mxu0 %v159
  %235 = vmatpush1.msra.mxu0 %v158
  %236 = vmatprep.subr.mxu0 %v161
  %237 = vmatpush1.msra.mxu0 %v160
  %238 = vmatprep.subr.mxu0 %v163
  %239 = vmatpush1.msra.mxu0 %v162
  %240 = vmatprep.mubr.f32.mxu0 %v99
  %241 = vmatmul.mubr.f32.gmra.mrb[0].mxu0 %v98
  %v242 = vpop.f32.mrb[0].mxu0
  %v243 = vadd.f32 %v169, %v242
  %v244 = vpop.f32.mrb[0].mxu0
  %v245 = vadd.f32 %v173, %v244
  %246 = vdwg.mxu0
  %v247 = vmax.f32 %v243, 0.0
  %v248 = vmax.f32 %v245, 0.0
  %v249 = vld [vmem:[%s3] sm:$0xff]
  %v250 = vld [vmem:[%s3 + $0x8] sm:$0xff]
  %v251 = vld [vmem:[%s3 + $0x10] sm:$0xff]
  %v252 = vld [vmem:[%s3 + $0x18] sm:$0xff]
  %v253 = vld [vmem:[%s3 + $0x20] sm:$0xff]
  %v254 = vld [vmem:[%s3 + $0x28] sm:$0xff]
  %v255 = vld [vmem:[%s3 + $0x30] sm:$0xff]
  %v256 = vld [vmem:[%s3 + $0x38] sm:$0xff]
  %v257 = vld [vmem:[%s3 + $0x40] sm:$0xff]
  %v258 = vld [vmem:[%s3 + $0x48] sm:$0xff]
  %v259 = vld [vmem:[%s3 + $0x50] sm:$0xff]
  %v260 = vld [vmem:[%s3 + $0x58] sm:$0xff]
  %v261 = vld [vmem:[%s3 + $0x60] sm:$0xff]
  %v262 = vld [vmem:[%s3 + $0x68] sm:$0xff]
  %v263 = vld [vmem:[%s3 + $0x70] sm:$0xff]
  %v264 = vld [vmem:[%s3 + $0x78] sm:$0xff]
  %v265 = vld [vmem:[%s3 + $0x80] sm:$0xff]
  %v266 = vld [vmem:[%s3 + $0x88] sm:$0xff]
  %v267 = vld [vmem:[%s3 + $0x90] sm:$0xff]
  %v268 = vld [vmem:[%s3 + $0x98] sm:$0xff]
  %v269 = vld [vmem:[%s3 + $0xa0] sm:$0xff]
  %v270 = vld [vmem:[%s3 + $0xa8] sm:$0xff]
  %v271 = vld [vmem:[%s3 + $0xb0] sm:$0xff]
  %v272 = vld [vmem:[%s3 + $0xb8] sm:$0xff]
  %v273 = vld [vmem:[%s3 + $0xc0] sm:$0xff]
  %v274 = vld [vmem:[%s3 + $0xc8] sm:$0xff]
  %v275 = vld [vmem:[%s3 + $0xd0] sm:$0xff]
  %v276 = vld [vmem:[%s3 + $0xd8] sm:$0xff]
  %v277 = vld [vmem:[%s3 + $0xe0] sm:$0xff]
  %v278 = vld [vmem:[%s3 + $0xe8] sm:$0xff]
  %v279 = vld [vmem:[%s3 + $0xf0] sm:$0xff]
  %v280 = vld [vmem:[%s3 + $0xf8] sm:$0xff]
  %v281 = vld [vmem:[%s4 + $0x2] sm:$0x1]
  %v283 = vlaneseq
  %v284 = vshrl.u32 %v283, 7
  %v285 = vsub.s32 0, %v284
  %v286 = vrot.slane %v281, %v285
  %288 = vmatprep.subr.mxu0 0.0
  %289 = vmatpush1.msra.mxu0 %v249
  %290 = vmatprep.subr.mxu0 0.0
  %291 = vmatpush1.msra.mxu0 %v250
  %292 = vmatprep.subr.mxu0 0.0
  %293 = vmatpush1.msra.mxu0 %v251
  %294 = vmatprep.subr.mxu0 0.0
  %295 = vmatpush1.msra.mxu0 %v252
  %296 = vmatprep.subr.mxu0 0.0
  %297 = vmatpush1.msra.mxu0 %v253
  %298 = vmatprep.subr.mxu0 0.0
  %299 = vmatpush1.msra.mxu0 %v254
  %300 = vmatprep.subr.mxu0 0.0
  %301 = vmatpush1.msra.mxu0 %v255
  %302 = vmatprep.subr.mxu0 0.0
  %303 = vmatpush1.msra.mxu0 %v256
  %304 = vmatprep.subr.mxu0 0.0
  %305 = vmatpush1.msra.mxu0 %v257
  %306 = vmatprep.subr.mxu0 0.0
  %307 = vmatpush1.msra.mxu0 %v258
  %308 = vmatprep.subr.mxu0 0.0
  %309 = vmatpush1.msra.mxu0 %v259
  %310 = vmatprep.subr.mxu0 0.0
  %311 = vmatpush1.msra.mxu0 %v260
  %312 = vmatprep.subr.mxu0 0.0
  %313 = vmatpush1.msra.mxu0 %v261
  %314 = vmatprep.subr.mxu0 0.0
  %315 = vmatpush1.msra.mxu0 %v262
  %316 = vmatprep.subr.mxu0 0.0
  %317 = vmatpush1.msra.mxu0 %v263
  %318 = vmatprep.subr.mxu0 0.0
  %319 = vmatpush1.msra.mxu0 %v264
  %320 = vmatprep.subr.mxu0 0.0
  %321 = vmatpush1.msra.mxu0 %v265
  %322 = vmatprep.subr.mxu0 0.0
  %323 = vmatpush1.msra.mxu0 %v266
  %324 = vmatprep.subr.mxu0 0.0
  %325 = vmatpush1.msra.mxu0 %v267
  %326 = vmatprep.subr.mxu0 0.0
  %327 = vmatpush1.msra.mxu0 %v268
  %328 = vmatprep.subr.mxu0 0.0
  %329 = vmatpush1.msra.mxu0 %v269
  %330 = vmatprep.subr.mxu0 0.0
  %331 = vmatpush1.msra.mxu0 %v270
  %332 = vmatprep.subr.mxu0 0.0
  %333 = vmatpush1.msra.mxu0 %v271
  %334 = vmatprep.subr.mxu0 0.0
  %335 = vmatpush1.msra.mxu0 %v272
  %336 = vmatprep.subr.mxu0 0.0
  %337 = vmatpush1.msra.mxu0 %v273
  %338 = vmatprep.subr.mxu0 0.0
  %339 = vmatpush1.msra.mxu0 %v274
  %340 = vmatprep.subr.mxu0 0.0
  %341 = vmatpush1.msra.mxu0 %v275
  %342 = vmatprep.subr.mxu0 0.0
  %343 = vmatpush1.msra.mxu0 %v276
  %344 = vmatprep.subr.mxu0 0.0
  %345 = vmatpush1.msra.mxu0 %v277
  %346 = vmatprep.subr.mxu0 0.0
  %347 = vmatpush1.msra.mxu0 %v278
  %348 = vmatprep.subr.mxu0 0.0
  %349 = vmatpush1.msra.mxu0 %v279
  %350 = vmatprep.subr.mxu0 0.0
  %351 = vmatpush1.msra.mxu0 %v280
  %352 = vmatprep.mubr.f32.mxu0 %v248
  %353 = vmatmul.mubr.f32.gmra.mrb[0].mxu0 %v247
  %v354 = vpop.f32.mrb[0].mxu0
  %v355 = vadd.f32 %v286, %v354
  %v356 = vpop.f32.mrb[0].mxu0
  %357 = vdwg.mxu0
  %358 = vst [vmem:[%s5] sm:$0xff] %v355
  // Predicated region
  $region22: #{policy_net_forward.1} parent=0 // pred_check
    _
  $region23: #{policy_net_forward.1} parent=0 // pred_check_branch
    %360 = sbr.rel (0) target = $region25
  $region24: #{policy_net_forward.1} parent=0 // pred_region
    _
  $region25: #{policy_net_forward.1} parent=0 // pred_fallthru
    _
  // Predicated region
  $region26: #{policy_net_forward.1} parent=0 // pred_check
    _
  $region27: #{policy_net_forward.1} parent=0 // pred_check_branch
    %362 = sbr.rel (0) target = $region29
  $region28: #{policy_net_forward.1} parent=0 // pred_region
    _
  $region29: #{policy_net_forward.1} parent=0 // pred_fallthru
    _

</llo_original>
